<compile_context>
chip_gen: v6e
topology: v6e:2x2x1
jax: 0.10.0
libtpu: 0.0.40
codegen_flags: <defaults>
</compile_context>

<pallas_src>
import functools

import jax
import jax.numpy as jnp
from jax import lax
from jax.experimental import pallas as pl
from jax.experimental.pallas import tpu as pltpu

BN_EPS = 1e-5

# Conv stack fixed by the PyTorch module: kernel sizes and PyTorch-'same' left pads.
KSIZES = (8, 5, 3)
LPADS = (3, 2, 1)                                          # left = (K-1)//2
MAX_L = max(LPADS)                                         # 3
MAX_R = max(k - 1 - p for k, p in zip(KSIZES, LPADS))      # 4


def _rup(v, m):
    return -(-v // m) * m


# --------------------------------------- kernel ---------------------------------------

def _feature_extractor_kernel(x_ref,
                              w1_ref, g1_ref, b1_ref,
                              w2_ref, g2_ref, b2_ref,
                              w3_ref, g3_ref, b3_ref,
                              maskr_ref, maskc_ref, pool_ref, invc_ref,
                              out_ref, pad_ref, *, N, L, LPP, NCLS, OUT_W):
    wtot = N * LPP
    inv_count = 1.0 / float(N * L)
    mask_row = maskr_ref[...]                 # (1, wtot) f32: 1 on real samples, 0 on pad lanes
    mask_col = maskc_ref[...]                 # (wtot, 1) f32: same mask as a column (MXU stats)

    # Zero ONLY the global halo margins of the activation scratch: interior columns are fully
    # overwritten every layer and per-segment pad lanes are re-zeroed by mask_row, so a
    # full-width zero sweep would be wasted vector stores.
    rows = pad_ref.shape[0]
    pad_ref[:, 0:MAX_L] = jnp.zeros((rows, MAX_L), pad_ref.dtype)
    pad_ref[:, MAX_L + wtot:MAX_L + wtot + MAX_R] = jnp.zeros((rows, MAX_R), pad_ref.dtype)

    def conv_bn_relu(src_ref, cin, w_ref, g_ref, b_ref, K, lk, last):
        # im2col: K statically shifted lane slices stacked on sublanes -> ONE bf16 MXU matmul
        # (f32 accumulate).  Contraction dim is exactly K*cin (no per-tap channel padding).
        taps = [src_ref[0:cin, MAX_L + (j - lk): MAX_L + (j - lk) + wtot] for j in range(K)]
        slab = jnp.concatenate(taps, axis=0)                                # (K*cin, wtot) bf16
        y = jnp.dot(w_ref[...], slab, preferred_element_type=jnp.float32)   # (Cout, wtot) f32

        # Masked one-pass BN batch stats on the MXU: the 0/1 mask column excludes the
        # conv-padding lanes AND replaces two wide XLU lane reductions.
        s = jnp.dot(y, mask_col, preferred_element_type=jnp.float32)        # (Cout, 1)
        ss = jnp.dot(y * y, mask_col, preferred_element_type=jnp.float32)   # (Cout, 1)
        mean = s * inv_count
        var = ss * inv_count - mean * mean      # biased variance (PyTorch training-mode BN)
        scale = g_ref[...] * lax.rsqrt(var + BN_EPS)
        shift = b_ref[...] - mean * scale
        h = jnp.maximum(y * scale + shift, 0.0)            # fused affine + ReLU, f32
        if last:
            # Layer-3 pad lanes hit all-zero rows of the pooling indicator; skip the mask.
            return h
        # Re-zero per-segment pad lanes so the next conv's halo reads stay exact; store bf16.
        return (h * mask_row).astype(pad_ref.dtype)

    # layer 1: Conv1d(k=8,'same') + BN + ReLU   (input slab comes pre-padded, bf16)
    h1 = conv_bn_relu(x_ref, x_ref.shape[0], w1_ref, g1_ref, b1_ref,
                      KSIZES[0], LPADS[0], last=False)
    pad_ref[0:h1.shape[0], MAX_L:MAX_L + wtot] = h1

    # layer 2: Conv1d(k=5,'same') + BN + ReLU
    cin2 = w2_ref.shape[1] // KSIZES[1]
    h2 = conv_bn_relu(pad_ref, cin2, w2_ref, g2_ref, b2_ref,
                      KSIZES[1], LPADS[1], last=False)
    pad_ref[0:h2.shape[0], MAX_L:MAX_L + wtot] = h2

    # layer 3: Conv1d(k=3,'same') + BN + ReLU
    cin3 = w3_ref.shape[1] // KSIZES[2]
    h3 = conv_bn_relu(pad_ref, cin3, w3_ref, g3_ref, b3_ref,
                      KSIZES[2], LPADS[2], last=True)                        # (nf, wtot) f32

    # AdaptiveAvgPool1d(num_classes): per-batch-segment matmul against the SHARED
    # (LPP, num_classes) 0/1 bin indicator + exact f32 1/bin-width scale  (O(N) structure).
    pool = pool_ref[...]
    invc = invc_ref[...]
    segs = [jnp.dot(h3[:, n * LPP:(n + 1) * LPP], pool,
                    preferred_element_type=jnp.float32) * invc
            for n in range(N)]
    if OUT_W > N * NCLS:                      # pad to a lane-dense output slab
        segs.append(jnp.zeros((h3.shape[0], OUT_W - N * NCLS), jnp.float32))
    p = jnp.concatenate(segs, axis=1)         # (nf, OUT_W)

    # Softmax over channels (sublane axis) == torch Softmax(dim=1); exact division.
    m = jnp.max(p, axis=0, keepdims=True)
    e = jnp.exp(p - m)
    out_ref[...] = e / jnp.sum(e, axis=0, keepdims=True)


# --------------------------------------- wrapper ---------------------------------------

def feature_extractor_forward(x, params, num_classes):
    """x: (N, num_features, L) float32 (PyTorch NCL). Returns (N, num_filters, num_classes)."""
    N, C0, L = x.shape
    nf = params["g3"].shape[0]                      # num_filters (channels of the last BN)
    LPP = _rup(L + MAX_L + MAX_R, 8)                # per-segment padded length (128 at prod L)
    WTOT = N * LPP                                  # flattened padded lane width
    WBIG = MAX_L + WTOT + MAX_R                     # + global margins for shifted tap slices
    OUT_W = max(128, _rup(N * num_classes, 128))    # lane-dense output width

    def w_fused(w):
        """Torch conv weight (Cout, Cin, K) -> bf16 (Cout, K*Cin); w2[o, j*Cin+c] == W[o,c,j].
        Bias-free (exactly cancelled by training-mode BN mean subtraction)."""
        o, i, k = w.shape
        return jnp.transpose(w, (0, 2, 1)).reshape(o, k * i).astype(jnp.bfloat16)

    def col(v):
        return v.reshape(-1, 1).astype(jnp.float32)

    # Input as a zero-padded bf16 slab (C0, WBIG): per-segment pad lanes + global margins.
    xt = jnp.transpose(x, (1, 0, 2)).astype(jnp.float32)                     # (C0, N, L)
    xp = jnp.pad(xt, ((0, 0), (0, 0), (MAX_L, LPP - MAX_L - L)))             # (C0, N, LPP)
    x_big = jnp.pad(xp.reshape(C0, WTOT), ((0, 0), (MAX_L, MAX_R)))
    x_big = x_big.astype(jnp.bfloat16)                                       # (C0, WBIG)

    # Interior-lane mask: row (post-ReLU re-zeroing) and column (MXU BN stats).
    pos = jnp.arange(WTOT) % LPP
    interior = ((pos >= MAX_L) & (pos < MAX_L + L)).astype(jnp.float32)
    mask_row = interior[None, :]
    mask_col = interior[:, None]

    # AdaptiveAvgPool1d bins as a shared per-segment (LPP, num_classes) 0/1 indicator
    # (vectorized iota comparisons, no scatter loop) plus an f32 1/bin-width row.
    cls = jnp.arange(num_classes)
    starts = (cls * L) // num_classes
    ends = -(-((cls + 1) * L) // num_classes)            # ceil
    lidx = jnp.arange(LPP)[:, None] - MAX_L
    pool_ind = ((lidx >= starts[None, :]) & (lidx < ends[None, :])).astype(jnp.float32)
    inv_cnt = (1.0 / (ends - starts).astype(jnp.float32))[None, :]

    args = (x_big,
            w_fused(params["w1"]), col(params["g1"]), col(params["be1"]),
            w_fused(params["w2"]), col(params["g2"]), col(params["be2"]),
            w_fused(params["w3"]), col(params["g3"]), col(params["be3"]),
            mask_row, mask_col, pool_ind, inv_cnt)

    scratch_rows = _rup(2 * nf, 8)
    # Explicit scoped-VMEM budget sized to the working set (+headroom); v5e defaults to 16 MiB.
    op_bytes = sum(int(a.size) * a.dtype.itemsize for a in args)
    op_bytes += scratch_rows * WBIG * 2 + nf * OUT_W * 4
    vmem_limit = int(min(max(4 * op_bytes + (2 << 20), 16 << 20), 64 << 20))

    kernel = functools.partial(_feature_extractor_kernel,
                               N=N, L=L, LPP=LPP, NCLS=num_classes, OUT_W=OUT_W)
    out2d = pl.pallas_call(
        kernel,
        out_shape=jax.ShapeDtypeStruct((nf, OUT_W), jnp.float32),
        in_specs=[pl.BlockSpec(memory_space=pltpu.MemorySpace.VMEM)] * len(args),
        out_specs=pl.BlockSpec(memory_space=pltpu.MemorySpace.VMEM),
        scratch_shapes=[pltpu.VMEM((scratch_rows, WBIG), jnp.bfloat16)],
        compiler_params=pltpu.CompilerParams(vmem_limit_bytes=vmem_limit),
    )(*args)

    # back to PyTorch layout (N, num_filters, num_classes)
    out = out2d[:, :N * num_classes].reshape(nf, N, num_classes)
    return jnp.transpose(out, (1, 0, 2))


# ----------------------------- params + pure-JAX reference -----------------------------

def init_params(key, num_features, num_filters):
    # Conv biases are kept in the params / reference for PyTorch fidelity; the Pallas kernel
    # drops them (a per-channel bias before training-mode BN is exactly cancelled).
    def conv_init(k, cout, cin, ksz):
        kw, kb = jax.random.split(k)
        bound = 1.0 / float((cin * ksz) ** 0.5)
        w = jax.random.uniform(kw, (cout, cin, ksz), jnp.float32, -bound, bound)
        b = jax.random.uniform(kb, (cout,), jnp.float32, -bound, bound)
        return w, b

    k1, k2, k3 = jax.random.split(key, 3)
    w1, b1 = conv_init(k1, num_filters, num_features, 8)
    w2, b2 = conv_init(k2, 2 * num_filters, num_filters, 5)
    w3, b3 = conv_init(k3, num_filters, 2 * num_filters, 3)
    return {
        "w1": w1, "b1": b1, "w2": w2, "b2": b2, "w3": w3, "b3": b3,
        "g1": jnp.ones((num_filters,), jnp.float32),
        "be1": jnp.zeros((num_filters,), jnp.float32),
        "g2": jnp.ones((2 * num_filters,), jnp.float32),
        "be2": jnp.zeros((2 * num_filters,), jnp.float32),
        "g3": jnp.ones((num_filters,), jnp.float32),
        "be3": jnp.zeros((num_filters,), jnp.float32),
    }


def reference_forward(x, params, num_classes, matmul_dtype=jnp.float32):
    """Plain-JAX reference with PyTorch semantics; matmul_dtype lets the check mirror the
    kernel's bf16 MXU operands (accumulation and everything else stays f32 either way)."""
    def conv(h, w, b, pad):
        y = lax.conv_general_dilated(
            h.astype(matmul_dtype), w.astype(matmul_dtype),
            window_strides=(1,), padding=[pad],
            dimension_numbers=("NCH", "OIH", "NCH"),
            preferred_element_type=jnp.float32)
        return y + b[None, :, None]

    def bn(h, g, bta):
        mean = jnp.mean(h, axis=(0, 2), keepdims=True)
        var = jnp.mean((h - mean) ** 2, axis=(0, 2), keepdims=True)
        return (h - mean) / jnp.sqrt(var + BN_EPS) * g[None, :, None] + bta[None, :, None]

    h = jax.nn.relu(bn(conv(x, params["w1"], params["b1"], (3, 4)), params["g1"], params["be1"]))
    h = jax.nn.relu(bn(conv(h, params["w2"], params["b2"], (2, 2)), params["g2"], params["be2"]))
    h = jax.nn.relu(bn(conv(h, params["w3"], params["b3"], (1, 1)), params["g3"], params["be3"]))
    L = h.shape[2]
    cols = []
    for i in range(num_classes):
        s = (i * L) // num_classes
        e = -(-((i + 1) * L) // num_classes)
        cols.append(jnp.mean(h[:, :, s:e], axis=2, keepdims=True))
    p = jnp.concatenate(cols, axis=2)
    return jax.nn.softmax(p, axis=1)


# ---------------------------------------- main ----------------------------------------

if __name__ == "__main__":
    num_features, num_classes, num_filters = 4, 3, 8
    N, L = 2, 16

    key = jax.random.PRNGKey(0)
    kx, kp = jax.random.split(key)
    x = jax.random.normal(kx, (N, num_features, L), jnp.float32)
    params = init_params(kp, num_features, num_filters)

    out = jax.block_until_ready(feature_extractor_forward(x, params, num_classes))

    assert out.shape == (N, num_filters, num_classes), out.shape
    assert bool(jnp.all(jnp.isfinite(out)))
    # Softmax over channels must sum to one (exact f32 division in the kernel).
    assert bool(jnp.allclose(jnp.sum(out, axis=1), 1.0, atol=1e-5))
    # Tight check against a reference with matching bf16-MXU numerics (f32 accumulation)...
    ref_bf16 = reference_forward(x, params, num_classes, matmul_dtype=jnp.bfloat16)
    assert bool(jnp.allclose(out, ref_bf16, atol=2e-3, rtol=2e-3))
    # ...and a PyTorch-fidelity check against the pure-f32 reference; the looser bound is the
    # documented cost of feeding the MXU bf16 operands (per the performance review).
    ref_f32 = reference_forward(x, params, num_classes)
    assert bool(jnp.allclose(out, ref_f32, atol=2e-2, rtol=2e-2))

    print("KERNEL_OK")
</pallas_src>

<mosaic_0001>
module attributes {stable_mosaic.version = 11 : i64} {
  func.func @_feature_extractor_kernel(%arg0: memref<4x55xbf16, #tpu.memory_space<vmem>>, %arg1: memref<8x32xbf16, #tpu.memory_space<vmem>>, %arg2: memref<8x1xf32, #tpu.memory_space<vmem>>, %arg3: memref<8x1xf32, #tpu.memory_space<vmem>>, %arg4: memref<16x40xbf16, #tpu.memory_space<vmem>>, %arg5: memref<16x1xf32, #tpu.memory_space<vmem>>, %arg6: memref<16x1xf32, #tpu.memory_space<vmem>>, %arg7: memref<8x48xbf16, #tpu.memory_space<vmem>>, %arg8: memref<8x1xf32, #tpu.memory_space<vmem>>, %arg9: memref<8x1xf32, #tpu.memory_space<vmem>>, %arg10: memref<1x48xf32, #tpu.memory_space<vmem>>, %arg11: memref<48x1xf32, #tpu.memory_space<vmem>>, %arg12: memref<24x3xf32, #tpu.memory_space<vmem>>, %arg13: memref<1x3xf32, #tpu.memory_space<vmem>>, %arg14: memref<8x128xf32, #tpu.memory_space<vmem>>, %arg15: memref<16x55xbf16, #tpu.memory_space<vmem>>) attributes {dimension_semantics = [], scalar_prefetch = 0 : i64, scratch_operands = 1 : i64, tpu.core_type = #tpu.core_type<tc>} {
    %c0 = arith.constant 0 : index
    %c0_0 = arith.constant 0 : index
    %0 = vector.load %arg10[%c0, %c0_0] : memref<1x48xf32, #tpu.memory_space<vmem>>, vector<1x48xf32>
    %c0_1 = arith.constant 0 : index
    %c0_2 = arith.constant 0 : index
    %1 = vector.load %arg11[%c0_1, %c0_2] : memref<48x1xf32, #tpu.memory_space<vmem>>, vector<48x1xf32>
    %cst = arith.constant 0.000000e+00 : bf16
    %2 = vector.broadcast %cst : bf16 to vector<16x3xbf16>
    %c0_3 = arith.constant 0 : index
    %c0_4 = arith.constant 0 : index
    %3 = vector.load %arg15[%c0_3, %c0_4] : memref<16x55xbf16, #tpu.memory_space<vmem>>, vector<16x3xbf16>
    tpu.vector_store %arg15[%c0_3, %c0_4], %2 {strides = array<i32>} : memref<16x55xbf16, #tpu.memory_space<vmem>>, vector<16x3xbf16>,
    %cst_5 = arith.constant 0.000000e+00 : bf16
    %4 = vector.broadcast %cst_5 : bf16 to vector<16x4xbf16>
    %c0_6 = arith.constant 0 : index
    %c51 = arith.constant 51 : index
    %5 = vector.load %arg15[%c0_6, %c51] : memref<16x55xbf16, #tpu.memory_space<vmem>>, vector<16x4xbf16>
    tpu.vector_store %arg15[%c0_6, %c51], %4 {strides = array<i32>} : memref<16x55xbf16, #tpu.memory_space<vmem>>, vector<16x4xbf16>,
    %c0_7 = arith.constant 0 : index
    %c0_8 = arith.constant 0 : index
    %6 = vector.load %arg0[%c0_7, %c0_8] : memref<4x55xbf16, #tpu.memory_space<vmem>>, vector<4x48xbf16>
    %c0_9 = arith.constant 0 : index
    %c1 = arith.constant 1 : index
    %7 = vector.load %arg0[%c0_9, %c1] : memref<4x55xbf16, #tpu.memory_space<vmem>>, vector<4x48xbf16>
    %c0_10 = arith.constant 0 : index
    %c2 = arith.constant 2 : index
    %8 = vector.load %arg0[%c0_10, %c2] : memref<4x55xbf16, #tpu.memory_space<vmem>>, vector<4x48xbf16>
    %c0_11 = arith.constant 0 : index
    %c3 = arith.constant 3 : index
    %9 = vector.load %arg0[%c0_11, %c3] : memref<4x55xbf16, #tpu.memory_space<vmem>>, vector<4x48xbf16>
    %c0_12 = arith.constant 0 : index
    %c4 = arith.constant 4 : index
    %10 = vector.load %arg0[%c0_12, %c4] : memref<4x55xbf16, #tpu.memory_space<vmem>>, vector<4x48xbf16>
    %c0_13 = arith.constant 0 : index
    %c5 = arith.constant 5 : index
    %11 = vector.load %arg0[%c0_13, %c5] : memref<4x55xbf16, #tpu.memory_space<vmem>>, vector<4x48xbf16>
    %c0_14 = arith.constant 0 : index
    %c6 = arith.constant 6 : index
    %12 = vector.load %arg0[%c0_14, %c6] : memref<4x55xbf16, #tpu.memory_space<vmem>>, vector<4x48xbf16>
    %c0_15 = arith.constant 0 : index
    %c7 = arith.constant 7 : index
    %13 = vector.load %arg0[%c0_15, %c7] : memref<4x55xbf16, #tpu.memory_space<vmem>>, vector<4x48xbf16>
    %14 = tpu.concatenate %6, %7, %8, %9, %10, %11, %12, %13 in 0 : vector<4x48xbf16>, vector<4x48xbf16>, vector<4x48xbf16>, vector<4x48xbf16>, vector<4x48xbf16>, vector<4x48xbf16>, vector<4x48xbf16>, vector<4x48xbf16> -> vector<32x48xbf16>
    %c0_16 = arith.constant 0 : index
    %c0_17 = arith.constant 0 : index
    %15 = vector.load %arg1[%c0_16, %c0_17] : memref<8x32xbf16, #tpu.memory_space<vmem>>, vector<8x32xbf16>
    %cst_18 = arith.constant dense<0.000000e+00> : vector<8x48xf32>
    %16 = tpu.matmul %15, %14, %cst_18 {dimension_numbers = #tpu.dot_dimension_numbers<[1], [0], [0], [1], [0, 0, 1, 1], [], []>} : vector<8x32xbf16>, vector<32x48xbf16>, vector<8x48xf32> -> vector<8x48xf32>
    %cst_19 = arith.constant dense<0.000000e+00> : vector<8x1xf32>
    %17 = tpu.matmul %16, %1, %cst_19 {dimension_numbers = #tpu.dot_dimension_numbers<[1], [0], [0], [1], [0, 0, 1, 1], [], []>} : vector<8x48xf32>, vector<48x1xf32>, vector<8x1xf32> -> vector<8x1xf32>
    %18 = arith.mulf %16, %16 : vector<8x48xf32>
    %cst_20 = arith.constant dense<0.000000e+00> : vector<8x1xf32>
    %19 = tpu.matmul %18, %1, %cst_20 {dimension_numbers = #tpu.dot_dimension_numbers<[1], [0], [0], [1], [0, 0, 1, 1], [], []>} : vector<8x48xf32>, vector<48x1xf32>, vector<8x1xf32> -> vector<8x1xf32>
    %cst_21 = arith.constant 3.125000e-02 : f32
    %20 = vector.broadcast %cst_21 : f32 to vector<8x1xf32>
    %21 = arith.mulf %17, %20 : vector<8x1xf32>
    %cst_22 = arith.constant 3.125000e-02 : f32
    %22 = vector.broadcast %cst_22 : f32 to vector<8x1xf32>
    %23 = arith.mulf %19, %22 : vector<8x1xf32>
    %24 = arith.mulf %21, %21 : vector<8x1xf32>
    %25 = arith.subf %23, %24 : vector<8x1xf32>
    %c0_23 = arith.constant 0 : index
    %c0_24 = arith.constant 0 : index
    %26 = vector.load %arg2[%c0_23, %c0_24] : memref<8x1xf32, #tpu.memory_space<vmem>>, vector<8x1xf32>
    %cst_25 = arith.constant 9.99999974E-6 : f32
    %27 = vector.broadcast %cst_25 : f32 to vector<8x1xf32>
    %28 = arith.addf %25, %27 : vector<8x1xf32>
    %29 = math.rsqrt %28 : vector<8x1xf32>
    %30 = arith.mulf %26, %29 : vector<8x1xf32>
    %c0_26 = arith.constant 0 : index
    %c0_27 = arith.constant 0 : index
    %31 = vector.load %arg3[%c0_26, %c0_27] : memref<8x1xf32, #tpu.memory_space<vmem>>, vector<8x1xf32>
    %32 = arith.mulf %21, %30 : vector<8x1xf32>
    %33 = arith.subf %31, %32 : vector<8x1xf32>
    %34 = vector.broadcast %30 : vector<8x1xf32> to vector<8x48xf32>
    %35 = arith.mulf %16, %34 : vector<8x48xf32>
    %36 = vector.broadcast %33 : vector<8x1xf32> to vector<8x48xf32>
    %37 = arith.addf %35, %36 : vector<8x48xf32>
    %cst_28 = arith.constant 0.000000e+00 : f32
    %38 = vector.broadcast %cst_28 : f32 to vector<8x48xf32>
    %39 = arith.maximumf %37, %38 : vector<8x48xf32>
    %40 = vector.broadcast %0 : vector<1x48xf32> to vector<8x48xf32>
    %41 = arith.mulf %39, %40 : vector<8x48xf32>
    %42 = arith.truncf %41 : vector<8x48xf32> to vector<8x48xbf16>
    %c0_29 = arith.constant 0 : index
    %c3_30 = arith.constant 3 : index
    %43 = vector.load %arg15[%c0_29, %c3_30] : memref<16x55xbf16, #tpu.memory_space<vmem>>, vector<8x48xbf16>
    tpu.vector_store %arg15[%c0_29, %c3_30], %42 {strides = array<i32>} : memref<16x55xbf16, #tpu.memory_space<vmem>>, vector<8x48xbf16>,
    %c0_31 = arith.constant 0 : index
    %c1_32 = arith.constant 1 : index
    %44 = vector.load %arg15[%c0_31, %c1_32] : memref<16x55xbf16, #tpu.memory_space<vmem>>, vector<8x48xbf16>
    %c0_33 = arith.constant 0 : index
    %c2_34 = arith.constant 2 : index
    %45 = vector.load %arg15[%c0_33, %c2_34] : memref<16x55xbf16, #tpu.memory_space<vmem>>, vector<8x48xbf16>
    %c0_35 = arith.constant 0 : index
    %c3_36 = arith.constant 3 : index
    %46 = vector.load %arg15[%c0_35, %c3_36] : memref<16x55xbf16, #tpu.memory_space<vmem>>, vector<8x48xbf16>
    %c0_37 = arith.constant 0 : index
    %c4_38 = arith.constant 4 : index
    %47 = vector.load %arg15[%c0_37, %c4_38] : memref<16x55xbf16, #tpu.memory_space<vmem>>, vector<8x48xbf16>
    %c0_39 = arith.constant 0 : index
    %c5_40 = arith.constant 5 : index
    %48 = vector.load %arg15[%c0_39, %c5_40] : memref<16x55xbf16, #tpu.memory_space<vmem>>, vector<8x48xbf16>
    %49 = tpu.concatenate %44, %45, %46, %47, %48 in 0 : vector<8x48xbf16>, vector<8x48xbf16>, vector<8x48xbf16>, vector<8x48xbf16>, vector<8x48xbf16> -> vector<40x48xbf16>
    %c0_41 = arith.constant 0 : index
    %c0_42 = arith.constant 0 : index
    %50 = vector.load %arg4[%c0_41, %c0_42] : memref<16x40xbf16, #tpu.memory_space<vmem>>, vector<16x40xbf16>
    %cst_43 = arith.constant dense<0.000000e+00> : vector<16x48xf32>
    %51 = tpu.matmul %50, %49, %cst_43 {dimension_numbers = #tpu.dot_dimension_numbers<[1], [0], [0], [1], [0, 0, 1, 1], [], []>} : vector<16x40xbf16>, vector<40x48xbf16>, vector<16x48xf32> -> vector<16x48xf32>
    %cst_44 = arith.constant dense<0.000000e+00> : vector<16x1xf32>
    %52 = tpu.matmul %51, %1, %cst_44 {dimension_numbers = #tpu.dot_dimension_numbers<[1], [0], [0], [1], [0, 0, 1, 1], [], []>} : vector<16x48xf32>, vector<48x1xf32>, vector<16x1xf32> -> vector<16x1xf32>
    %53 = arith.mulf %51, %51 : vector<16x48xf32>
    %cst_45 = arith.constant dense<0.000000e+00> : vector<16x1xf32>
    %54 = tpu.matmul %53, %1, %cst_45 {dimension_numbers = #tpu.dot_dimension_numbers<[1], [0], [0], [1], [0, 0, 1, 1], [], []>} : vector<16x48xf32>, vector<48x1xf32>, vector<16x1xf32> -> vector<16x1xf32>
    %cst_46 = arith.constant 3.125000e-02 : f32
    %55 = vector.broadcast %cst_46 : f32 to vector<16x1xf32>
    %56 = arith.mulf %52, %55 : vector<16x1xf32>
    %cst_47 = arith.constant 3.125000e-02 : f32
    %57 = vector.broadcast %cst_47 : f32 to vector<16x1xf32>
    %58 = arith.mulf %54, %57 : vector<16x1xf32>
    %59 = arith.mulf %56, %56 : vector<16x1xf32>
    %60 = arith.subf %58, %59 : vector<16x1xf32>
    %c0_48 = arith.constant 0 : index
    %c0_49 = arith.constant 0 : index
    %61 = vector.load %arg5[%c0_48, %c0_49] : memref<16x1xf32, #tpu.memory_space<vmem>>, vector<16x1xf32>
    %cst_50 = arith.constant 9.99999974E-6 : f32
    %62 = vector.broadcast %cst_50 : f32 to vector<16x1xf32>
    %63 = arith.addf %60, %62 : vector<16x1xf32>
    %64 = math.rsqrt %63 : vector<16x1xf32>
    %65 = arith.mulf %61, %64 : vector<16x1xf32>
    %c0_51 = arith.constant 0 : index
    %c0_52 = arith.constant 0 : index
    %66 = vector.load %arg6[%c0_51, %c0_52] : memref<16x1xf32, #tpu.memory_space<vmem>>, vector<16x1xf32>
    %67 = arith.mulf %56, %65 : vector<16x1xf32>
    %68 = arith.subf %66, %67 : vector<16x1xf32>
    %69 = vector.broadcast %65 : vector<16x1xf32> to vector<16x48xf32>
    %70 = arith.mulf %51, %69 : vector<16x48xf32>
    %71 = vector.broadcast %68 : vector<16x1xf32> to vector<16x48xf32>
    %72 = arith.addf %70, %71 : vector<16x48xf32>
    %cst_53 = arith.constant 0.000000e+00 : f32
    %73 = vector.broadcast %cst_53 : f32 to vector<16x48xf32>
    %74 = arith.maximumf %72, %73 : vector<16x48xf32>
    %75 = vector.broadcast %0 : vector<1x48xf32> to vector<16x48xf32>
    %76 = arith.mulf %74, %75 : vector<16x48xf32>
    %77 = arith.truncf %76 : vector<16x48xf32> to vector<16x48xbf16>
    %c0_54 = arith.constant 0 : index
    %c3_55 = arith.constant 3 : index
    %78 = vector.load %arg15[%c0_54, %c3_55] : memref<16x55xbf16, #tpu.memory_space<vmem>>, vector<16x48xbf16>
    tpu.vector_store %arg15[%c0_54, %c3_55], %77 {strides = array<i32>} : memref<16x55xbf16, #tpu.memory_space<vmem>>, vector<16x48xbf16>,
    %c0_56 = arith.constant 0 : index
    %c2_57 = arith.constant 2 : index
    %79 = vector.load %arg15[%c0_56, %c2_57] : memref<16x55xbf16, #tpu.memory_space<vmem>>, vector<16x48xbf16>
    %c0_58 = arith.constant 0 : index
    %c3_59 = arith.constant 3 : index
    %80 = vector.load %arg15[%c0_58, %c3_59] : memref<16x55xbf16, #tpu.memory_space<vmem>>, vector<16x48xbf16>
    %c0_60 = arith.constant 0 : index
    %c4_61 = arith.constant 4 : index
    %81 = vector.load %arg15[%c0_60, %c4_61] : memref<16x55xbf16, #tpu.memory_space<vmem>>, vector<16x48xbf16>
    %82 = tpu.concatenate %79, %80, %81 in 0 : vector<16x48xbf16>, vector<16x48xbf16>, vector<16x48xbf16> -> vector<48x48xbf16>
    %c0_62 = arith.constant 0 : index
    %c0_63 = arith.constant 0 : index
    %83 = vector.load %arg7[%c0_62, %c0_63] : memref<8x48xbf16, #tpu.memory_space<vmem>>, vector<8x48xbf16>
    %cst_64 = arith.constant dense<0.000000e+00> : vector<8x48xf32>
    %84 = tpu.matmul %83, %82, %cst_64 {dimension_numbers = #tpu.dot_dimension_numbers<[1], [0], [0], [1], [0, 0, 1, 1], [], []>} : vector<8x48xbf16>, vector<48x48xbf16>, vector<8x48xf32> -> vector<8x48xf32>
    %cst_65 = arith.constant dense<0.000000e+00> : vector<8x1xf32>
    %85 = tpu.matmul %84, %1, %cst_65 {dimension_numbers = #tpu.dot_dimension_numbers<[1], [0], [0], [1], [0, 0, 1, 1], [], []>} : vector<8x48xf32>, vector<48x1xf32>, vector<8x1xf32> -> vector<8x1xf32>
    %86 = arith.mulf %84, %84 : vector<8x48xf32>
    %cst_66 = arith.constant dense<0.000000e+00> : vector<8x1xf32>
    %87 = tpu.matmul %86, %1, %cst_66 {dimension_numbers = #tpu.dot_dimension_numbers<[1], [0], [0], [1], [0, 0, 1, 1], [], []>} : vector<8x48xf32>, vector<48x1xf32>, vector<8x1xf32> -> vector<8x1xf32>
    %cst_67 = arith.constant 3.125000e-02 : f32
    %88 = vector.broadcast %cst_67 : f32 to vector<8x1xf32>
    %89 = arith.mulf %85, %88 : vector<8x1xf32>
    %cst_68 = arith.constant 3.125000e-02 : f32
    %90 = vector.broadcast %cst_68 : f32 to vector<8x1xf32>
    %91 = arith.mulf %87, %90 : vector<8x1xf32>
    %92 = arith.mulf %89, %89 : vector<8x1xf32>
    %93 = arith.subf %91, %92 : vector<8x1xf32>
    %c0_69 = arith.constant 0 : index
    %c0_70 = arith.constant 0 : index
    %94 = vector.load %arg8[%c0_69, %c0_70] : memref<8x1xf32, #tpu.memory_space<vmem>>, vector<8x1xf32>
    %cst_71 = arith.constant 9.99999974E-6 : f32
    %95 = vector.broadcast %cst_71 : f32 to vector<8x1xf32>
    %96 = arith.addf %93, %95 : vector<8x1xf32>
    %97 = math.rsqrt %96 : vector<8x1xf32>
    %98 = arith.mulf %94, %97 : vector<8x1xf32>
    %c0_72 = arith.constant 0 : index
    %c0_73 = arith.constant 0 : index
    %99 = vector.load %arg9[%c0_72, %c0_73] : memref<8x1xf32, #tpu.memory_space<vmem>>, vector<8x1xf32>
    %100 = arith.mulf %89, %98 : vector<8x1xf32>
    %101 = arith.subf %99, %100 : vector<8x1xf32>
    %102 = vector.broadcast %98 : vector<8x1xf32> to vector<8x48xf32>
    %103 = arith.mulf %84, %102 : vector<8x48xf32>
    %104 = vector.broadcast %101 : vector<8x1xf32> to vector<8x48xf32>
    %105 = arith.addf %103, %104 : vector<8x48xf32>
    %cst_74 = arith.constant 0.000000e+00 : f32
    %106 = vector.broadcast %cst_74 : f32 to vector<8x48xf32>
    %107 = arith.maximumf %105, %106 : vector<8x48xf32>
    %c0_75 = arith.constant 0 : index
    %c0_76 = arith.constant 0 : index
    %108 = vector.load %arg12[%c0_75, %c0_76] : memref<24x3xf32, #tpu.memory_space<vmem>>, vector<24x3xf32>
    %c0_77 = arith.constant 0 : index
    %c0_78 = arith.constant 0 : index
    %109 = vector.load %arg13[%c0_77, %c0_78] : memref<1x3xf32, #tpu.memory_space<vmem>>, vector<1x3xf32>
    %110 = vector.extract_strided_slice %107 {offsets = [0, 0], sizes = [8, 24], strides = [1, 1]} : vector<8x48xf32> to vector<8x24xf32>
    %cst_79 = arith.constant dense<0.000000e+00> : vector<8x3xf32>
    %111 = tpu.matmul %110, %108, %cst_79 {dimension_numbers = #tpu.dot_dimension_numbers<[1], [0], [0], [1], [0, 0, 1, 1], [], []>} : vector<8x24xf32>, vector<24x3xf32>, vector<8x3xf32> -> vector<8x3xf32>
    %112 = vector.broadcast %109 : vector<1x3xf32> to vector<8x3xf32>
    %113 = arith.mulf %111, %112 : vector<8x3xf32>
    %114 = vector.extract_strided_slice %107 {offsets = [0, 24], sizes = [8, 24], strides = [1, 1]} : vector<8x48xf32> to vector<8x24xf32>
    %cst_80 = arith.constant dense<0.000000e+00> : vector<8x3xf32>
    %115 = tpu.matmul %114, %108, %cst_80 {dimension_numbers = #tpu.dot_dimension_numbers<[1], [0], [0], [1], [0, 0, 1, 1], [], []>} : vector<8x24xf32>, vector<24x3xf32>, vector<8x3xf32> -> vector<8x3xf32>
    %116 = vector.broadcast %109 : vector<1x3xf32> to vector<8x3xf32>
    %117 = arith.mulf %115, %116 : vector<8x3xf32>
    %cst_81 = arith.constant 0.000000e+00 : f32
    %118 = vector.broadcast %cst_81 : f32 to vector<8x122xf32>
    %119 = tpu.concatenate %113, %117, %118 in 1 : vector<8x3xf32>, vector<8x3xf32>, vector<8x122xf32> -> vector<8x128xf32>
    %cst_82 = arith.constant dense<0xFF800000> : vector<128xf32>
    %120 = vector.multi_reduction <maximumf>, %119, %cst_82 [0] : vector<8x128xf32> to vector<128xf32>
    %121 = vector.shape_cast %120 : vector<128xf32> to vector<1x128xf32>
    %122 = vector.broadcast %121 : vector<1x128xf32> to vector<8x128xf32>
    %123 = arith.subf %119, %122 : vector<8x128xf32>
    %124 = math.exp %123 : vector<8x128xf32>
    %cst_83 = arith.constant dense<0.000000e+00> : vector<128xf32>
    %125 = vector.multi_reduction <add>, %124, %cst_83 [0] : vector<8x128xf32> to vector<128xf32>
    %126 = vector.shape_cast %125 : vector<128xf32> to vector<1x128xf32>
    %127 = vector.broadcast %126 : vector<1x128xf32> to vector<8x128xf32>
    %128 = arith.divf %124, %127 : vector<8x128xf32>
    %c0_84 = arith.constant 0 : index
    %c0_85 = arith.constant 0 : index
    %129 = vector.load %arg14[%c0_84, %c0_85] : memref<8x128xf32, #tpu.memory_space<vmem>>, vector<8x128xf32>
    tpu.vector_store %arg14[%c0_84, %c0_85], %128 {strides = array<i32>} : memref<8x128xf32, #tpu.memory_space<vmem>>, vector<8x128xf32>,
    return
  }
}

</mosaic_0001>

<llo_original>
// kernel: tpu_custom_call.1
$region0: #{tpu_custom_call.1}
  #allocation0 [shape = 'u32[]', space=smem, size = 0x4, offset = 0x4, fixed_abs, tag = 'smem constant byte address 0x4 - core index']
  #allocation1 [shape = 'u32[144,128]{1,0:T(1,128)}', space=vmem, size = 0x12000, scoped, tag = 'internal scratch']
  #allocation2 [shape = 'bf16[16,55]{1,0:T(8,128)(2,1)}', space=vmem, size = 0x1000, scoped, tag = 'scratch operand']
  %s0 = inlined_call_operand.vmem [shape: bf16[4,55], index: 0, kind: input, shape index: {}]
  %s1 = inlined_call_operand.vmem [shape: bf16[8,32], index: 1, kind: input, shape index: {}]
  %s2 = inlined_call_operand.vmem [shape: f32[8,1], index: 2, kind: input, shape index: {}]
  %s3 = inlined_call_operand.vmem [shape: f32[8,1], index: 3, kind: input, shape index: {}]
  %s4 = inlined_call_operand.vmem [shape: bf16[16,40], index: 4, kind: input, shape index: {}]
  %s5 = inlined_call_operand.vmem [shape: f32[16,1], index: 5, kind: input, shape index: {}]
  %s6 = inlined_call_operand.vmem [shape: f32[16,1], index: 6, kind: input, shape index: {}]
  %s7 = inlined_call_operand.vmem [shape: bf16[8,48], index: 7, kind: input, shape index: {}]
  %s8 = inlined_call_operand.vmem [shape: f32[8,1], index: 8, kind: input, shape index: {}]
  %s9 = inlined_call_operand.vmem [shape: f32[8,1], index: 9, kind: input, shape index: {}]
  %s10 = inlined_call_operand.vmem [shape: f32[1,48], index: 10, kind: input, shape index: {}]
  %s11 = inlined_call_operand.vmem [shape: f32[48,1], index: 11, kind: input, shape index: {}]
  %s12 = inlined_call_operand.vmem [shape: f32[24,3], index: 12, kind: input, shape index: {}]
  %s13 = inlined_call_operand.vmem [shape: f32[1,3], index: 13, kind: input, shape index: {}]
  %s14 = inlined_call_operand.hbm [shape: f32[8,128], index: 14, kind: output, shape index: {}]
  %s15 = sld [smem:[#allocation0]]
  $region66: #{tpu_custom_call.1} parent=0
    _
  %s17 = ssub.s32 1, %s15
  %s18 = scalar_select 0, %s17, %s15
  $region1: #{tpu_custom_call.1} parent=0
    #allocation3 [shape = 'u8[4096]{0}', space=vmem, size = 0x1000, scoped, tag = 'output window, operand 0, single buffered']
    #allocation4 [shape = 's32[1]{0}', space=sflag, size = 0x4, scoped, tag = 'scoped memory for tpu_custom_call.1']
    %19 = vsyncpa [#allocation4], 0
    // Predicated region
    $region2: #{tpu_custom_call.1} parent=1 // pred_check
      _
    $region3: #{tpu_custom_call.1} parent=1 // pred_check_branch
      %21 = sbr.rel (0) target = $region5
    $region4: #{tpu_custom_call.1} parent=1 // pred_region
      _
    $region5: #{tpu_custom_call.1} parent=1 // pred_fallthru
      _
    // Predicated region
    $region6: #{tpu_custom_call.1} parent=1 // pred_check
      _
    $region7: #{tpu_custom_call.1} parent=1 // pred_check_branch
      %23 = sbr.rel (0) target = $region9
    $region8: #{tpu_custom_call.1} parent=1 // pred_region
      _
    $region9: #{tpu_custom_call.1} parent=1 // pred_fallthru
      _
    // Predicated region
    $region10: #{tpu_custom_call.1} parent=1 // pred_check
      _
    $region11: #{tpu_custom_call.1} parent=1 // pred_check_branch
      %25 = sbr.rel (0) target = $region13
    $region12: #{tpu_custom_call.1} parent=1 // pred_region
      _
    $region13: #{tpu_custom_call.1} parent=1 // pred_fallthru
      _
    // Predicated region
    $region14: #{tpu_custom_call.1} parent=1 // pred_check
      _
    $region15: #{tpu_custom_call.1} parent=1 // pred_check_branch
      %27 = sbr.rel (0) target = $region17
    $region16: #{tpu_custom_call.1} parent=1 // pred_region
      _
    $region17: #{tpu_custom_call.1} parent=1 // pred_fallthru
      _
    // Predicated region
    $region18: #{tpu_custom_call.1} parent=1 // pred_check
      _
    $region19: #{tpu_custom_call.1} parent=1 // pred_check_branch
      %29 = sbr.rel (0) target = $region21
    $region20: #{tpu_custom_call.1} parent=1 // pred_region
      _
    $region21: #{tpu_custom_call.1} parent=1 // pred_fallthru
      _
    // Predicated region
    $region22: #{tpu_custom_call.1} parent=1 // pred_check
      _
    $region23: #{tpu_custom_call.1} parent=1 // pred_check_branch
      %31 = sbr.rel (0) target = $region25
    $region24: #{tpu_custom_call.1} parent=1 // pred_region
      _
    $region25: #{tpu_custom_call.1} parent=1 // pred_fallthru
      _
    // Predicated region
    $region26: #{tpu_custom_call.1} parent=1 // pred_check
      _
    $region27: #{tpu_custom_call.1} parent=1 // pred_check_branch
      %33 = sbr.rel (0) target = $region29
    $region28: #{tpu_custom_call.1} parent=1 // pred_region
      _
    $region29: #{tpu_custom_call.1} parent=1 // pred_fallthru
      _
    // Predicated region
    $region30: #{tpu_custom_call.1} parent=1 // pred_check
      _
    $region31: #{tpu_custom_call.1} parent=1 // pred_check_branch
      %35 = sbr.rel (0) target = $region33
    $region32: #{tpu_custom_call.1} parent=1 // pred_region
      _
    $region33: #{tpu_custom_call.1} parent=1 // pred_fallthru
      _
    // Predicated region
    $region34: #{tpu_custom_call.1} parent=1 // pred_check
      _
    $region35: #{tpu_custom_call.1} parent=1 // pred_check_branch
      %37 = sbr.rel (0) target = $region37
    $region36: #{tpu_custom_call.1} parent=1 // pred_region
      _
    $region37: #{tpu_custom_call.1} parent=1 // pred_fallthru
      _
    // Predicated region
    $region38: #{tpu_custom_call.1} parent=1 // pred_check
      _
    $region39: #{tpu_custom_call.1} parent=1 // pred_check_branch
      %39 = sbr.rel (0) target = $region41
    $region40: #{tpu_custom_call.1} parent=1 // pred_region
      _
    $region41: #{tpu_custom_call.1} parent=1 // pred_fallthru
      _
    // Predicated region
    $region42: #{tpu_custom_call.1} parent=1 // pred_check
      _
    $region43: #{tpu_custom_call.1} parent=1 // pred_check_branch
      %41 = sbr.rel (0) target = $region45
    $region44: #{tpu_custom_call.1} parent=1 // pred_region
      _
    $region45: #{tpu_custom_call.1} parent=1 // pred_fallthru
      _
    // Predicated region
    $region46: #{tpu_custom_call.1} parent=1 // pred_check
      _
    $region47: #{tpu_custom_call.1} parent=1 // pred_check_branch
      %43 = sbr.rel (0) target = $region49
    $region48: #{tpu_custom_call.1} parent=1 // pred_region
      _
    $region49: #{tpu_custom_call.1} parent=1 // pred_fallthru
      _
    // Predicated region
    $region50: #{tpu_custom_call.1} parent=1 // pred_check
      _
    $region51: #{tpu_custom_call.1} parent=1 // pred_check_branch
      %45 = sbr.rel (0) target = $region53
    $region52: #{tpu_custom_call.1} parent=1 // pred_region
      _
    $region53: #{tpu_custom_call.1} parent=1 // pred_fallthru
      _
    // Predicated region
    $region54: #{tpu_custom_call.1} parent=1 // pred_check
      _
    $region55: #{tpu_custom_call.1} parent=1 // pred_check_branch
      %47 = sbr.rel (0) target = $region57
    $region56: #{tpu_custom_call.1} parent=1 // pred_region
      _
    $region57: #{tpu_custom_call.1} parent=1 // pred_fallthru
      _
    %v49 = vld [vmem:[%s10] sm:$0x1]
    %v50 = vld [vmem:[%s11] sm:$0xff]
    %v51 = vld [vmem:[%s11 + $0x8] sm:$0xff]
    %v52 = vld [vmem:[%s11 + $0x10] sm:$0xff]
    %v53 = vld [vmem:[%s11 + $0x18] sm:$0xff]
    %v54 = vld [vmem:[%s11 + $0x20] sm:$0xff]
    %v55 = vld [vmem:[%s11 + $0x28] sm:$0xff]
    %vm56 = vcmask 19456
    %57 = vst.msk [vmem:[#allocation2] sm:$0xf] %vm56, 0
    %58 = vst.msk [vmem:[#allocation2 + $0x4] sm:$0xf] %vm56, 0
    %vm59 = vcmask 445848
    %60 = vst.msk [vmem:[#allocation2] sm:$0xf] %vm59, 0
    %61 = vst.msk [vmem:[#allocation2 + $0x4] sm:$0xf] %vm59, 0
    %v62 = vld [vmem:[%s0] sm:$0x3]
    %v64 = vcombine.low %v62, %v62
    %v66 = vunpack.c.l.s4 1983009808
    %v67 = vunpack.c.0.s8 %v66
    %v68 = vlaneseq
    %v69 = vshrl.u32 %v68, 7
    %v70 = vsub.s32 %v67, %v69
    %v71 = vrot.slane %v64, %v70
    %v73 = vunpack.c.l.s4 1983009808
    %v74 = vunpack.c.0.s8 %v73
    %v75 = vlaneseq
    %v76 = vshrl.u32 %v75, 7
    %v77 = vsub.s32 %v74, %v76
    %v78 = vrot.slane %v62, %v77
    %79 = vrot.lane.b32.xlu0 %v71, 127
    %v80 = vpop.permute.xlu0 %79
    %v81 = vcombine.low %v78, %v78
    %82 = vrot.lane.b32.xlu0 %v81, 126
    %v83 = vpop.permute.xlu0 %82
    %v84 = vcombine.low %v71, %v71
    %85 = vrot.lane.b32.xlu0 %v84, 125
    %v86 = vpop.permute.xlu0 %85
    %87 = vrot.lane.b32.xlu0 %v78, 124
    %v88 = vpop.permute.xlu0 %87
    %89 = vrot.lane.b32.xlu0 %v71, 123
    %v90 = vpop.permute.xlu0 %89
    %91 = vrot.lane.b32.xlu0 %v81, 122
    %v92 = vpop.permute.xlu0 %91
    %93 = vrot.lane.b32.xlu0 %v84, 121
    %v94 = vpop.permute.xlu0 %93
    %vm95 = vcmask 1041408
    %v98 = vsel %vm95, %v62, %v80
    %vm99 = vcmask 1043456
    %v101 = vsel %vm99, %v98, %v83
    %vm102 = vcmask 1045504
    %v104 = vsel %vm102, %v101, %v86
    %v108 = vsel %vm95, %v88, %v90
    %v110 = vsel %vm99, %v108, %v92
    %v112 = vsel %vm102, %v110, %v94
    %v114 = vld [vmem:[%s1] sm:$0xf]
    %vm115 = vcmask 261120
    %v117 = vsel %vm115, %v114, 0
    %119 = vmatprep.subr.bf16.mxu0 0
    %120 = vmatpush1.bf16.msra.mxu0 0
    %121 = vmatprep.subr.bf16.mxu0 0
    %122 = vmatpush1.bf16.msra.mxu0 0
    %123 = vmatprep.subr.bf16.mxu0 0
    %124 = vmatpush1.bf16.msra.mxu0 0
    %125 = vmatprep.subr.bf16.mxu0 0
    %126 = vmatpush1.bf16.msra.mxu0 0
    %127 = vmatprep.subr.bf16.mxu0 0
    %128 = vmatpush1.bf16.msra.mxu0 0
    %129 = vmatprep.subr.bf16.mxu0 0
    %130 = vmatpush1.bf16.msra.mxu0 0
    %131 = vmatprep.subr.bf16.mxu0 0
    %132 = vmatpush1.bf16.msra.mxu0 %v112
    %133 = vmatprep.subr.bf16.mxu0 0
    %134 = vmatpush1.bf16.msra.mxu0 %v104
    %135 = vmatprep.subr.bf16.mxu0 0
    %136 = vmatpush2.bf16.msra.mxu0 0
    %137 = vmatprep.subr.bf16.mxu0 0
    %138 = vmatpush2.bf16.msra.mxu0 0
    %139 = vmatprep.subr.bf16.mxu0 0
    %140 = vmatpush2.bf16.msra.mxu0 0
    %141 = vmatprep.subr.bf16.mxu0 0
    %142 = vmatpush2.bf16.msra.mxu0 0
    %143 = vmatprep.subr.bf16.mxu0 0
    %144 = vmatpush2.bf16.msra.mxu0 0
    %145 = vmatprep.subr.bf16.mxu0 0
    %146 = vmatpush2.bf16.msra.mxu0 0
    %147 = vmatprep.subr.bf16.mxu0 0
    %148 = vmatpush2.bf16.msra.mxu0 0
    %149 = vmatprep.subr.bf16.mxu0 0
    %150 = vmatpush2.bf16.msra.mxu0 0
    %151 = vmatprep.mubr.bf16.mxu0 0
    %152 = vmatmul.mubr.bf16.gmra.mxu0 %v117
    %v153 = vpop.f32.mrf.mxu0
    %v154 = vadd.f32 0.0, %v153
    %v155 = vpop.f32.mrf.mxu0
    %v156 = vpop.f32.mrf.mxu0
    %v157 = vpop.f32.mrf.mxu0
    %158 = vdwg.mxu0
    %vm159 = vcmask 392192
    %v161 = vsel %vm159, %v154, 0
    %163 = vmatprep.subr.mxu0 0.0
    %164 = vmatpush1.msra.mxu0 0.0
    %165 = vmatprep.subr.mxu0 0.0
    %166 = vmatpush1.msra.mxu0 0.0
    %167 = vmatprep.subr.mxu0 0.0
    %168 = vmatpush1.msra.mxu0 0.0
    %169 = vmatprep.subr.mxu0 0.0
    %170 = vmatpush1.msra.mxu0 0.0
    %171 = vmatprep.subr.mxu0 0.0
    %172 = vmatpush1.msra.mxu0 0.0
    %173 = vmatprep.subr.mxu0 0.0
    %174 = vmatpush1.msra.mxu0 0.0
    %175 = vmatprep.subr.mxu0 0.0
    %176 = vmatpush1.msra.mxu0 0.0
    %177 = vmatprep.subr.mxu0 0.0
    %178 = vmatpush1.msra.mxu0 0.0
    %179 = vmatprep.subr.mxu0 0.0
    %180 = vmatpush1.msra.mxu0 0.0
    %181 = vmatprep.subr.mxu0 0.0
    %182 = vmatpush1.msra.mxu0 0.0
    %183 = vmatprep.subr.mxu0 0.0
    %184 = vmatpush1.msra.mxu0 %v55
    %185 = vmatprep.subr.mxu0 0.0
    %186 = vmatpush1.msra.mxu0 %v54
    %187 = vmatprep.subr.mxu0 0.0
    %188 = vmatpush1.msra.mxu0 %v53
    %189 = vmatprep.subr.mxu0 0.0
    %190 = vmatpush1.msra.mxu0 %v52
    %191 = vmatprep.subr.mxu0 0.0
    %192 = vmatpush1.msra.mxu0 %v51
    %193 = vmatprep.subr.mxu0 0.0
    %194 = vmatpush1.msra.mxu0 %v50
    %195 = vmatprep.subr.mxu0 0.0
    %196 = vmatpush2.msra.mxu0 0.0
    %197 = vmatprep.subr.mxu0 0.0
    %198 = vmatpush2.msra.mxu0 0.0
    %199 = vmatprep.subr.mxu0 0.0
    %200 = vmatpush2.msra.mxu0 0.0
    %201 = vmatprep.subr.mxu0 0.0
    %202 = vmatpush2.msra.mxu0 0.0
    %203 = vmatprep.subr.mxu0 0.0
    %204 = vmatpush2.msra.mxu0 0.0
    %205 = vmatprep.subr.mxu0 0.0
    %206 = vmatpush2.msra.mxu0 0.0
    %207 = vmatprep.subr.mxu0 0.0
    %208 = vmatpush2.msra.mxu0 0.0
    %209 = vmatprep.subr.mxu0 0.0
    %210 = vmatpush2.msra.mxu0 0.0
    %211 = vmatprep.subr.mxu0 0.0
    %212 = vmatpush2.msra.mxu0 0.0
    %213 = vmatprep.subr.mxu0 0.0
    %214 = vmatpush2.msra.mxu0 0.0
    %215 = vmatprep.subr.mxu0 0.0
    %216 = vmatpush2.msra.mxu0 0.0
    %217 = vmatprep.subr.mxu0 0.0
    %218 = vmatpush2.msra.mxu0 0.0
    %219 = vmatprep.subr.mxu0 0.0
    %220 = vmatpush2.msra.mxu0 0.0
    %221 = vmatprep.subr.mxu0 0.0
    %222 = vmatpush2.msra.mxu0 0.0
    %223 = vmatprep.subr.mxu0 0.0
    %224 = vmatpush2.msra.mxu0 0.0
    %225 = vmatprep.subr.mxu0 0.0
    %226 = vmatpush2.msra.mxu0 0.0
    %227 = vmatprep.mubr.f32.mxu0 0.0
    %228 = vmatmul.mubr.f32.gmra.mxu0 %v161
    %v229 = vpop.f32.mrf.mxu0
    %v230 = vadd.f32 0.0, %v229
    %v231 = vpop.f32.mrf.mxu0
    %232 = vdwg.mxu0
    %v233 = vmul.f32 %v154, %v154
    %v235 = vsel %vm159, %v233, 0
    %237 = vmatprep.subr.mxu0 0.0
    %238 = vmatpush1.msra.mxu0 0.0
    %239 = vmatprep.subr.mxu0 0.0
    %240 = vmatpush1.msra.mxu0 0.0
    %241 = vmatprep.subr.mxu0 0.0
    %242 = vmatpush1.msra.mxu0 0.0
    %243 = vmatprep.subr.mxu0 0.0
    %244 = vmatpush1.msra.mxu0 0.0
    %245 = vmatprep.subr.mxu0 0.0
    %246 = vmatpush1.msra.mxu0 0.0
    %247 = vmatprep.subr.mxu0 0.0
    %248 = vmatpush1.msra.mxu0 0.0
    %249 = vmatprep.subr.mxu0 0.0
    %250 = vmatpush1.msra.mxu0 0.0
    %251 = vmatprep.subr.mxu0 0.0
    %252 = vmatpush1.msra.mxu0 0.0
    %253 = vmatprep.subr.mxu0 0.0
    %254 = vmatpush1.msra.mxu0 0.0
    %255 = vmatprep.subr.mxu0 0.0
    %256 = vmatpush1.msra.mxu0 0.0
    %257 = vmatprep.subr.mxu0 0.0
    %258 = vmatpush1.msra.mxu0 %v55
    %259 = vmatprep.subr.mxu0 0.0
    %260 = vmatpush1.msra.mxu0 %v54
    %261 = vmatprep.subr.mxu0 0.0
    %262 = vmatpush1.msra.mxu0 %v53
    %263 = vmatprep.subr.mxu0 0.0
    %264 = vmatpush1.msra.mxu0 %v52
    %265 = vmatprep.subr.mxu0 0.0
    %266 = vmatpush1.msra.mxu0 %v51
    %267 = vmatprep.subr.mxu0 0.0
    %268 = vmatpush1.msra.mxu0 %v50
    %269 = vmatprep.subr.mxu0 0.0
    %270 = vmatpush2.msra.mxu0 0.0
    %271 = vmatprep.subr.mxu0 0.0
    %272 = vmatpush2.msra.mxu0 0.0
    %273 = vmatprep.subr.mxu0 0.0
    %274 = vmatpush2.msra.mxu0 0.0
    %275 = vmatprep.subr.mxu0 0.0
    %276 = vmatpush2.msra.mxu0 0.0
    %277 = vmatprep.subr.mxu0 0.0
    %278 = vmatpush2.msra.mxu0 0.0
    %279 = vmatprep.subr.mxu0 0.0
    %280 = vmatpush2.msra.mxu0 0.0
    %281 = vmatprep.subr.mxu0 0.0
    %282 = vmatpush2.msra.mxu0 0.0
    %283 = vmatprep.subr.mxu0 0.0
    %284 = vmatpush2.msra.mxu0 0.0
    %285 = vmatprep.subr.mxu0 0.0
    %286 = vmatpush2.msra.mxu0 0.0
    %287 = vmatprep.subr.mxu0 0.0
    %288 = vmatpush2.msra.mxu0 0.0
    %289 = vmatprep.subr.mxu0 0.0
    %290 = vmatpush2.msra.mxu0 0.0
    %291 = vmatprep.subr.mxu0 0.0
    %292 = vmatpush2.msra.mxu0 0.0
    %293 = vmatprep.subr.mxu0 0.0
    %294 = vmatpush2.msra.mxu0 0.0
    %295 = vmatprep.subr.mxu0 0.0
    %296 = vmatpush2.msra.mxu0 0.0
    %297 = vmatprep.subr.mxu0 0.0
    %298 = vmatpush2.msra.mxu0 0.0
    %299 = vmatprep.subr.mxu0 0.0
    %300 = vmatpush2.msra.mxu0 0.0
    %301 = vmatprep.mubr.f32.mxu0 0.0
    %302 = vmatmul.mubr.f32.gmra.mxu0 %v235
    %v303 = vpop.f32.mrf.mxu0
    %v304 = vadd.f32 0.0, %v303
    %v305 = vpop.f32.mrf.mxu0
    %306 = vdwg.mxu0
    %v307 = vmul.f32 %v230, 0.03125
    %v308 = vmul.f32 %v304, 0.03125
    %v309 = vmul.f32 %v307, %v307
    %v310 = vsub.f32 %v308, %v309
    %v311 = vld [vmem:[%s2] sm:$0xff]
    %v312 = vadd.f32 %v310, 1e-05
    %v313 = vrsqrt.pop %v312
    %v314 = vmul.f32 %v311, %v313
    %v315 = vld [vmem:[%s3] sm:$0xff]
    %v316 = vmul.f32 %v307, %v314
    %v317 = vsub.f32 %v315, %v316
    %319 = vset.pattern.permute.xlu0 0
    %320 = vperm.xlu0 %319, %v314
    %v321 = vpop.permute.xlu0 %320
    %v323 = vmul.f32 %v154, %v321
    %325 = vset.pattern.permute.xlu0 0
    %326 = vperm.xlu0 %325, %v317
    %v327 = vpop.permute.xlu0 %326
    %v329 = vadd.f32 %v323, %v327
    %v330 = vmax.f32 %v329, 0.0
    %v332 = vlaneseq
    %v333 = vshrl.u32 %v332, 7
    %v334 = vsub.s32 0, %v333
    %v335 = vrot.slane %v49, %v334
    %v337 = vmul.f32 %v330, %v335
    %v338 = vpack.c.bf16 %v337, %v337
    %v340 = vunpack.c.l.b16 %v338
    %v341 = vpack.c.b16 %v340, %v340
    %342 = vrot.lane.b32.xlu0 %v341, 3
    %v343 = vpop.permute.xlu0 %342
    %vm345 = vcmask 412696
    %346 = vst.msk [vmem:[#allocation2] sm:$0xf] %vm345, %v343
    %v347 = vld [vmem:[#allocation2] sm:$0xf]
    %v349 = vunpack.c.l.b16 %v347
    %v350 = vpack.c.b16 %v349, %v349
    %351 = vrot.lane.b32.xlu0 %v350, 127
    %v352 = vpop.permute.xlu0 %351
    %353 = vrot.lane.b32.xlu0 %v350, 126
    %v354 = vpop.permute.xlu0 %353
    %355 = vrot.lane.b32.xlu0 %v350, 125
    %v356 = vpop.permute.xlu0 %355
    %357 = vrot.lane.b32.xlu0 %v350, 124
    %v358 = vpop.permute.xlu0 %357
    %v361 = vsel %vm99, %v347, %v352
    %v364 = vsel %vm99, %v354, %v356
    %v365 = vld [vmem:[%s4] sm:$0xf]
    %v366 = vld [vmem:[%s4 + $0x4] sm:$0xf]
    %v369 = vunpack.c.l.b16 %v365
    %v370 = vunpack.c.l.b16 %v366
    %v371 = vpack.c.b16 %v370, %v369
    %374 = vrot.lane.b32.xlu0 %v361, 127
    %v375 = vpop.permute.xlu0 %374
    %376 = vrot.lane.b32.xlu0 %v364, 127
    %v377 = vpop.permute.xlu0 %376
    %378 = vrot.lane.b32.xlu0 %v358, 127
    %v379 = vpop.permute.xlu0 %378
    %vm382 = vcmask 326656
    %v384 = vsel %vm382, %v371, 0
    %v387 = vsel %vm99, %v379, 0
    %389 = vmatprep.subr.bf16.mxu0 0
    %390 = vmatpush1.bf16.msra.mxu0 0
    %391 = vmatprep.subr.bf16.mxu0 0
    %392 = vmatpush1.bf16.msra.mxu0 0
    %393 = vmatprep.subr.bf16.mxu0 0
    %394 = vmatpush1.bf16.msra.mxu0 0
    %395 = vmatprep.subr.bf16.mxu0 0
    %396 = vmatpush1.bf16.msra.mxu0 0
    %397 = vmatprep.subr.bf16.mxu0 0
    %398 = vmatpush1.bf16.msra.mxu0 0
    %399 = vmatprep.subr.bf16.mxu0 0
    %400 = vmatpush1.bf16.msra.mxu0 %v387
    %401 = vmatprep.subr.bf16.mxu0 0
    %402 = vmatpush1.bf16.msra.mxu0 %v377
    %403 = vmatprep.subr.bf16.mxu0 0
    %404 = vmatpush1.bf16.msra.mxu0 %v375
    %405 = vmatprep.subr.bf16.mxu0 0
    %406 = vmatpush2.bf16.msra.mxu0 0
    %407 = vmatprep.subr.bf16.mxu0 0
    %408 = vmatpush2.bf16.msra.mxu0 0
    %409 = vmatprep.subr.bf16.mxu0 0
    %410 = vmatpush2.bf16.msra.mxu0 0
    %411 = vmatprep.subr.bf16.mxu0 0
    %412 = vmatpush2.bf16.msra.mxu0 0
    %413 = vmatprep.subr.bf16.mxu0 0
    %414 = vmatpush2.bf16.msra.mxu0 0
    %415 = vmatprep.subr.bf16.mxu0 0
    %416 = vmatpush2.bf16.msra.mxu0 0
    %417 = vmatprep.subr.bf16.mxu0 0
    %418 = vmatpush2.bf16.msra.mxu0 0
    %419 = vmatprep.subr.bf16.mxu0 0
    %420 = vmatpush2.bf16.msra.mxu0 0
    %421 = vmatprep.mubr.bf16.mxu0 0
    %422 = vmatmul.mubr.bf16.gmra.mxu0 %v384
    %v423 = vpop.f32.mrf.mxu0
    %v424 = vadd.f32 0.0, %v423
    %v425 = vpop.f32.mrf.mxu0
    %v426 = vpop.f32.mrf.mxu0
    %v427 = vadd.f32 0.0, %v426
    %v428 = vpop.f32.mrf.mxu0
    %429 = vdwg.mxu0
    %v431 = vsel %vm159, %v424, 0
    %v434 = vsel %vm159, %v427, 0
    %436 = vmatprep.subr.mxu0 0.0
    %437 = vmatpush1.msra.mxu0 0.0
    %438 = vmatprep.subr.mxu0 0.0
    %439 = vmatpush1.msra.mxu0 0.0
    %440 = vmatprep.subr.mxu0 0.0
    %441 = vmatpush1.msra.mxu0 0.0
    %442 = vmatprep.subr.mxu0 0.0
    %443 = vmatpush1.msra.mxu0 0.0
    %444 = vmatprep.subr.mxu0 0.0
    %445 = vmatpush1.msra.mxu0 0.0
    %446 = vmatprep.subr.mxu0 0.0
    %447 = vmatpush1.msra.mxu0 0.0
    %448 = vmatprep.subr.mxu0 0.0
    %449 = vmatpush1.msra.mxu0 0.0
    %450 = vmatprep.subr.mxu0 0.0
    %451 = vmatpush1.msra.mxu0 0.0
    %452 = vmatprep.subr.mxu0 0.0
    %453 = vmatpush1.msra.mxu0 0.0
    %454 = vmatprep.subr.mxu0 0.0
    %455 = vmatpush1.msra.mxu0 0.0
    %456 = vmatprep.subr.mxu0 0.0
    %457 = vmatpush1.msra.mxu0 %v55
    %458 = vmatprep.subr.mxu0 0.0
    %459 = vmatpush1.msra.mxu0 %v54
    %460 = vmatprep.subr.mxu0 0.0
    %461 = vmatpush1.msra.mxu0 %v53
    %462 = vmatprep.subr.mxu0 0.0
    %463 = vmatpush1.msra.mxu0 %v52
    %464 = vmatprep.subr.mxu0 0.0
    %465 = vmatpush1.msra.mxu0 %v51
    %466 = vmatprep.subr.mxu0 0.0
    %467 = vmatpush1.msra.mxu0 %v50
    %468 = vmatprep.subr.mxu0 0.0
    %469 = vmatpush2.msra.mxu0 0.0
    %470 = vmatprep.subr.mxu0 0.0
    %471 = vmatpush2.msra.mxu0 0.0
    %472 = vmatprep.subr.mxu0 0.0
    %473 = vmatpush2.msra.mxu0 0.0
    %474 = vmatprep.subr.mxu0 0.0
    %475 = vmatpush2.msra.mxu0 0.0
    %476 = vmatprep.subr.mxu0 0.0
    %477 = vmatpush2.msra.mxu0 0.0
    %478 = vmatprep.subr.mxu0 0.0
    %479 = vmatpush2.msra.mxu0 0.0
    %480 = vmatprep.subr.mxu0 0.0
    %481 = vmatpush2.msra.mxu0 0.0
    %482 = vmatprep.subr.mxu0 0.0
    %483 = vmatpush2.msra.mxu0 0.0
    %484 = vmatprep.subr.mxu0 0.0
    %485 = vmatpush2.msra.mxu0 0.0
    %486 = vmatprep.subr.mxu0 0.0
    %487 = vmatpush2.msra.mxu0 0.0
    %488 = vmatprep.subr.mxu0 0.0
    %489 = vmatpush2.msra.mxu0 0.0
    %490 = vmatprep.subr.mxu0 0.0
    %491 = vmatpush2.msra.mxu0 0.0
    %492 = vmatprep.subr.mxu0 0.0
    %493 = vmatpush2.msra.mxu0 0.0
    %494 = vmatprep.subr.mxu0 0.0
    %495 = vmatpush2.msra.mxu0 0.0
    %496 = vmatprep.subr.mxu0 0.0
    %497 = vmatpush2.msra.mxu0 0.0
    %498 = vmatprep.subr.mxu0 0.0
    %499 = vmatpush2.msra.mxu0 0.0
    %500 = vmatprep.mubr.f32.mxu0 0.0
    %501 = vmatmul.mubr.f32.gmra.mxu0 %v431
    %v502 = vpop.f32.mrf.mxu0
    %v503 = vadd.f32 0.0, %v502
    %v504 = vpop.f32.mrf.mxu0
    %505 = vmatprep.mubr.f32.mxu0 0.0
    %506 = vmatmul.mubr.f32.gmra.mxu0 %v434
    %v507 = vpop.f32.mrf.mxu0
    %v508 = vadd.f32 0.0, %v507
    %v509 = vpop.f32.mrf.mxu0
    %510 = vdwg.mxu0
    %v511 = vmul.f32 %v424, %v424
    %v512 = vmul.f32 %v427, %v427
    %v514 = vsel %vm159, %v511, 0
    %v517 = vsel %vm159, %v512, 0
    %519 = vmatprep.subr.mxu0 0.0
    %520 = vmatpush1.msra.mxu0 0.0
    %521 = vmatprep.subr.mxu0 0.0
    %522 = vmatpush1.msra.mxu0 0.0
    %523 = vmatprep.subr.mxu0 0.0
    %524 = vmatpush1.msra.mxu0 0.0
    %525 = vmatprep.subr.mxu0 0.0
    %526 = vmatpush1.msra.mxu0 0.0
    %527 = vmatprep.subr.mxu0 0.0
    %528 = vmatpush1.msra.mxu0 0.0
    %529 = vmatprep.subr.mxu0 0.0
    %530 = vmatpush1.msra.mxu0 0.0
    %531 = vmatprep.subr.mxu0 0.0
    %532 = vmatpush1.msra.mxu0 0.0
    %533 = vmatprep.subr.mxu0 0.0
    %534 = vmatpush1.msra.mxu0 0.0
    %535 = vmatprep.subr.mxu0 0.0
    %536 = vmatpush1.msra.mxu0 0.0
    %537 = vmatprep.subr.mxu0 0.0
    %538 = vmatpush1.msra.mxu0 0.0
    %539 = vmatprep.subr.mxu0 0.0
    %540 = vmatpush1.msra.mxu0 %v55
    %541 = vmatprep.subr.mxu0 0.0
    %542 = vmatpush1.msra.mxu0 %v54
    %543 = vmatprep.subr.mxu0 0.0
    %544 = vmatpush1.msra.mxu0 %v53
    %545 = vmatprep.subr.mxu0 0.0
    %546 = vmatpush1.msra.mxu0 %v52
    %547 = vmatprep.subr.mxu0 0.0
    %548 = vmatpush1.msra.mxu0 %v51
    %549 = vmatprep.subr.mxu0 0.0
    %550 = vmatpush1.msra.mxu0 %v50
    %551 = vmatprep.subr.mxu0 0.0
    %552 = vmatpush2.msra.mxu0 0.0
    %553 = vmatprep.subr.mxu0 0.0
    %554 = vmatpush2.msra.mxu0 0.0
    %555 = vmatprep.subr.mxu0 0.0
    %556 = vmatpush2.msra.mxu0 0.0
    %557 = vmatprep.subr.mxu0 0.0
    %558 = vmatpush2.msra.mxu0 0.0
    %559 = vmatprep.subr.mxu0 0.0
    %560 = vmatpush2.msra.mxu0 0.0
    %561 = vmatprep.subr.mxu0 0.0
    %562 = vmatpush2.msra.mxu0 0.0
    %563 = vmatprep.subr.mxu0 0.0
    %564 = vmatpush2.msra.mxu0 0.0
    %565 = vmatprep.subr.mxu0 0.0
    %566 = vmatpush2.msra.mxu0 0.0
    %567 = vmatprep.subr.mxu0 0.0
    %568 = vmatpush2.msra.mxu0 0.0
    %569 = vmatprep.subr.mxu0 0.0
    %570 = vmatpush2.msra.mxu0 0.0
    %571 = vmatprep.subr.mxu0 0.0
    %572 = vmatpush2.msra.mxu0 0.0
    %573 = vmatprep.subr.mxu0 0.0
    %574 = vmatpush2.msra.mxu0 0.0
    %575 = vmatprep.subr.mxu0 0.0
    %576 = vmatpush2.msra.mxu0 0.0
    %577 = vmatprep.subr.mxu0 0.0
    %578 = vmatpush2.msra.mxu0 0.0
    %579 = vmatprep.subr.mxu0 0.0
    %580 = vmatpush2.msra.mxu0 0.0
    %581 = vmatprep.subr.mxu0 0.0
    %582 = vmatpush2.msra.mxu0 0.0
    %583 = vmatprep.mubr.f32.mxu0 0.0
    %584 = vmatmul.mubr.f32.gmra.mxu0 %v514
    %v585 = vpop.f32.mrf.mxu0
    %v586 = vadd.f32 0.0, %v585
    %v587 = vpop.f32.mrf.mxu0
    %588 = vmatprep.mubr.f32.mxu0 0.0
    %589 = vmatmul.mubr.f32.gmra.mxu0 %v517
    %v590 = vpop.f32.mrf.mxu0
    %v591 = vadd.f32 0.0, %v590
    %v592 = vpop.f32.mrf.mxu0
    %593 = vdwg.mxu0
    %v594 = vmul.f32 %v503, 0.03125
    %v595 = vmul.f32 %v508, 0.03125
    %v596 = vmul.f32 %v586, 0.03125
    %v597 = vmul.f32 %v591, 0.03125
    %v598 = vmul.f32 %v594, %v594
    %v599 = vmul.f32 %v595, %v595
    %v600 = vsub.f32 %v596, %v598
    %v601 = vsub.f32 %v597, %v599
    %v602 = vld [vmem:[%s5] sm:$0xff]
    %v603 = vld [vmem:[%s5 + $0x8] sm:$0xff]
    %v604 = vadd.f32 %v600, 1e-05
    %v605 = vadd.f32 %v601, 1e-05
    %v606 = vrsqrt.pop %v604
    %v607 = vrsqrt.pop %v605
    %v608 = vmul.f32 %v602, %v606
    %v609 = vmul.f32 %v603, %v607
    %v610 = vld [vmem:[%s6] sm:$0xff]
    %v611 = vld [vmem:[%s6 + $0x8] sm:$0xff]
    %v612 = vmul.f32 %v594, %v608
    %v613 = vmul.f32 %v595, %v609
    %v614 = vsub.f32 %v610, %v612
    %v615 = vsub.f32 %v611, %v613
    %617 = vset.pattern.permute.xlu0 0
    %618 = vperm.xlu0 %617, %v608
    %v619 = vpop.permute.xlu0 %618
    %622 = vset.pattern.permute.xlu0 0
    %623 = vperm.xlu0 %622, %v609
    %v624 = vpop.permute.xlu0 %623
    %v626 = vmul.f32 %v424, %v619
    %v627 = vmul.f32 %v427, %v624
    %629 = vset.pattern.permute.xlu0 0
    %630 = vperm.xlu0 %629, %v614
    %v631 = vpop.permute.xlu0 %630
    %634 = vset.pattern.permute.xlu0 0
    %635 = vperm.xlu0 %634, %v615
    %v636 = vpop.permute.xlu0 %635
    %v638 = vadd.f32 %v626, %v631
    %v639 = vadd.f32 %v627, %v636
    %v640 = vmax.f32 %v638, 0.0
    %v641 = vmax.f32 %v639, 0.0
    %v642 = vmul.f32 %v640, %v335
    %v643 = vmul.f32 %v641, %v335
    %v644 = vpack.c.bf16 %v643, %v642
    %v646 = vunpack.c.l.b16 %v644
    %v647 = vunpack.c.h.b16 %v644
    %v648 = vpack.c.b16 %v646, %v646
    %v649 = vpack.c.b16 %v647, %v647
    %650 = vrot.lane.b32.xlu0 %v648, 3
    %v651 = vpop.permute.xlu0 %650
    %652 = vrot.lane.b32.xlu0 %v649, 3
    %v653 = vpop.permute.xlu0 %652
    %656 = vst.msk [vmem:[#allocation2] sm:$0xf] %vm345, %v651
    %657 = vst.msk [vmem:[#allocation2 + $0x4] sm:$0xf] %vm345, %v653
    %v658 = vld [vmem:[#allocation2] sm:$0xf]
    %v659 = vld [vmem:[#allocation2 + $0x4] sm:$0xf]
    %v662 = vunpack.c.l.b16 %v658
    %v663 = vunpack.c.l.b16 %v659
    %v664 = vpack.c.b16 %v663, %v662
    %665 = vrot.lane.b32.xlu0 %v664, 127
    %v666 = vpop.permute.xlu0 %665
    %667 = vrot.lane.b32.xlu0 %v664, 126
    %v668 = vpop.permute.xlu0 %667
    %v669 = vld [vmem:[%s7] sm:$0xf]
    %670 = vrot.lane.b32.xlu0 %v666, 126
    %v671 = vpop.permute.xlu0 %670
    %672 = vrot.lane.b32.xlu0 %v668, 126
    %v673 = vpop.permute.xlu0 %672
    %v678 = vsel %vm159, %v669, 0
    %680 = vmatprep.subr.bf16.mxu0 0
    %681 = vmatpush1.bf16.msra.mxu0 0
    %682 = vmatprep.subr.bf16.mxu0 0
    %683 = vmatpush1.bf16.msra.mxu0 0
    %684 = vmatprep.subr.bf16.mxu0 0
    %685 = vmatpush1.bf16.msra.mxu0 0
    %686 = vmatprep.subr.bf16.mxu0 0
    %687 = vmatpush1.bf16.msra.mxu0 0
    %688 = vmatprep.subr.bf16.mxu0 0
    %689 = vmatpush1.bf16.msra.mxu0 0
    %690 = vmatprep.subr.bf16.mxu0 0
    %691 = vmatpush1.bf16.msra.mxu0 %v673
    %692 = vmatprep.subr.bf16.mxu0 0
    %693 = vmatpush1.bf16.msra.mxu0 %v671
    %694 = vmatprep.subr.bf16.mxu0 0
    %695 = vmatpush1.bf16.msra.mxu0 %v668
    %696 = vmatprep.subr.bf16.mxu0 0
    %697 = vmatpush2.bf16.msra.mxu0 0
    %698 = vmatprep.subr.bf16.mxu0 0
    %699 = vmatpush2.bf16.msra.mxu0 0
    %700 = vmatprep.subr.bf16.mxu0 0
    %701 = vmatpush2.bf16.msra.mxu0 0
    %702 = vmatprep.subr.bf16.mxu0 0
    %703 = vmatpush2.bf16.msra.mxu0 0
    %704 = vmatprep.subr.bf16.mxu0 0
    %705 = vmatpush2.bf16.msra.mxu0 0
    %706 = vmatprep.subr.bf16.mxu0 0
    %707 = vmatpush2.bf16.msra.mxu0 0
    %708 = vmatprep.subr.bf16.mxu0 0
    %709 = vmatpush2.bf16.msra.mxu0 0
    %710 = vmatprep.subr.bf16.mxu0 0
    %711 = vmatpush2.bf16.msra.mxu0 0
    %712 = vmatprep.mubr.bf16.mxu0 0
    %713 = vmatmul.mubr.bf16.gmra.mxu0 %v678
    %v714 = vpop.f32.mrf.mxu0
    %v715 = vadd.f32 0.0, %v714
    %v716 = vpop.f32.mrf.mxu0
    %v717 = vpop.f32.mrf.mxu0
    %v718 = vpop.f32.mrf.mxu0
    %719 = vdwg.mxu0
    %v721 = vsel %vm159, %v715, 0
    %723 = vmatprep.subr.mxu0 0.0
    %724 = vmatpush1.msra.mxu0 0.0
    %725 = vmatprep.subr.mxu0 0.0
    %726 = vmatpush1.msra.mxu0 0.0
    %727 = vmatprep.subr.mxu0 0.0
    %728 = vmatpush1.msra.mxu0 0.0
    %729 = vmatprep.subr.mxu0 0.0
    %730 = vmatpush1.msra.mxu0 0.0
    %731 = vmatprep.subr.mxu0 0.0
    %732 = vmatpush1.msra.mxu0 0.0
    %733 = vmatprep.subr.mxu0 0.0
    %734 = vmatpush1.msra.mxu0 0.0
    %735 = vmatprep.subr.mxu0 0.0
    %736 = vmatpush1.msra.mxu0 0.0
    %737 = vmatprep.subr.mxu0 0.0
    %738 = vmatpush1.msra.mxu0 0.0
    %739 = vmatprep.subr.mxu0 0.0
    %740 = vmatpush1.msra.mxu0 0.0
    %741 = vmatprep.subr.mxu0 0.0
    %742 = vmatpush1.msra.mxu0 0.0
    %743 = vmatprep.subr.mxu0 0.0
    %744 = vmatpush1.msra.mxu0 %v55
    %745 = vmatprep.subr.mxu0 0.0
    %746 = vmatpush1.msra.mxu0 %v54
    %747 = vmatprep.subr.mxu0 0.0
    %748 = vmatpush1.msra.mxu0 %v53
    %749 = vmatprep.subr.mxu0 0.0
    %750 = vmatpush1.msra.mxu0 %v52
    %751 = vmatprep.subr.mxu0 0.0
    %752 = vmatpush1.msra.mxu0 %v51
    %753 = vmatprep.subr.mxu0 0.0
    %754 = vmatpush1.msra.mxu0 %v50
    %755 = vmatprep.subr.mxu0 0.0
    %756 = vmatpush2.msra.mxu0 0.0
    %757 = vmatprep.subr.mxu0 0.0
    %758 = vmatpush2.msra.mxu0 0.0
    %759 = vmatprep.subr.mxu0 0.0
    %760 = vmatpush2.msra.mxu0 0.0
    %761 = vmatprep.subr.mxu0 0.0
    %762 = vmatpush2.msra.mxu0 0.0
    %763 = vmatprep.subr.mxu0 0.0
    %764 = vmatpush2.msra.mxu0 0.0
    %765 = vmatprep.subr.mxu0 0.0
    %766 = vmatpush2.msra.mxu0 0.0
    %767 = vmatprep.subr.mxu0 0.0
    %768 = vmatpush2.msra.mxu0 0.0
    %769 = vmatprep.subr.mxu0 0.0
    %770 = vmatpush2.msra.mxu0 0.0
    %771 = vmatprep.subr.mxu0 0.0
    %772 = vmatpush2.msra.mxu0 0.0
    %773 = vmatprep.subr.mxu0 0.0
    %774 = vmatpush2.msra.mxu0 0.0
    %775 = vmatprep.subr.mxu0 0.0
    %776 = vmatpush2.msra.mxu0 0.0
    %777 = vmatprep.subr.mxu0 0.0
    %778 = vmatpush2.msra.mxu0 0.0
    %779 = vmatprep.subr.mxu0 0.0
    %780 = vmatpush2.msra.mxu0 0.0
    %781 = vmatprep.subr.mxu0 0.0
    %782 = vmatpush2.msra.mxu0 0.0
    %783 = vmatprep.subr.mxu0 0.0
    %784 = vmatpush2.msra.mxu0 0.0
    %785 = vmatprep.subr.mxu0 0.0
    %786 = vmatpush2.msra.mxu0 0.0
    %787 = vmatprep.mubr.f32.mxu0 0.0
    %788 = vmatmul.mubr.f32.gmra.mxu0 %v721
    %v789 = vpop.f32.mrf.mxu0
    %v790 = vadd.f32 0.0, %v789
    %v791 = vpop.f32.mrf.mxu0
    %792 = vdwg.mxu0
    %v793 = vmul.f32 %v715, %v715
    %v795 = vsel %vm159, %v793, 0
    %797 = vmatprep.subr.mxu0 0.0
    %798 = vmatpush1.msra.mxu0 0.0
    %799 = vmatprep.subr.mxu0 0.0
    %800 = vmatpush1.msra.mxu0 0.0
    %801 = vmatprep.subr.mxu0 0.0
    %802 = vmatpush1.msra.mxu0 0.0
    %803 = vmatprep.subr.mxu0 0.0
    %804 = vmatpush1.msra.mxu0 0.0
    %805 = vmatprep.subr.mxu0 0.0
    %806 = vmatpush1.msra.mxu0 0.0
    %807 = vmatprep.subr.mxu0 0.0
    %808 = vmatpush1.msra.mxu0 0.0
    %809 = vmatprep.subr.mxu0 0.0
    %810 = vmatpush1.msra.mxu0 0.0
    %811 = vmatprep.subr.mxu0 0.0
    %812 = vmatpush1.msra.mxu0 0.0
    %813 = vmatprep.subr.mxu0 0.0
    %814 = vmatpush1.msra.mxu0 0.0
    %815 = vmatprep.subr.mxu0 0.0
    %816 = vmatpush1.msra.mxu0 0.0
    %817 = vmatprep.subr.mxu0 0.0
    %818 = vmatpush1.msra.mxu0 %v55
    %819 = vmatprep.subr.mxu0 0.0
    %820 = vmatpush1.msra.mxu0 %v54
    %821 = vmatprep.subr.mxu0 0.0
    %822 = vmatpush1.msra.mxu0 %v53
    %823 = vmatprep.subr.mxu0 0.0
    %824 = vmatpush1.msra.mxu0 %v52
    %825 = vmatprep.subr.mxu0 0.0
    %826 = vmatpush1.msra.mxu0 %v51
    %827 = vmatprep.subr.mxu0 0.0
    %828 = vmatpush1.msra.mxu0 %v50
    %829 = vmatprep.subr.mxu0 0.0
    %830 = vmatpush2.msra.mxu0 0.0
    %831 = vmatprep.subr.mxu0 0.0
    %832 = vmatpush2.msra.mxu0 0.0
    %833 = vmatprep.subr.mxu0 0.0
    %834 = vmatpush2.msra.mxu0 0.0
    %835 = vmatprep.subr.mxu0 0.0
    %836 = vmatpush2.msra.mxu0 0.0
    %837 = vmatprep.subr.mxu0 0.0
    %838 = vmatpush2.msra.mxu0 0.0
    %839 = vmatprep.subr.mxu0 0.0
    %840 = vmatpush2.msra.mxu0 0.0
    %841 = vmatprep.subr.mxu0 0.0
    %842 = vmatpush2.msra.mxu0 0.0
    %843 = vmatprep.subr.mxu0 0.0
    %844 = vmatpush2.msra.mxu0 0.0
    %845 = vmatprep.subr.mxu0 0.0
    %846 = vmatpush2.msra.mxu0 0.0
    %847 = vmatprep.subr.mxu0 0.0
    %848 = vmatpush2.msra.mxu0 0.0
    %849 = vmatprep.subr.mxu0 0.0
    %850 = vmatpush2.msra.mxu0 0.0
    %851 = vmatprep.subr.mxu0 0.0
    %852 = vmatpush2.msra.mxu0 0.0
    %853 = vmatprep.subr.mxu0 0.0
    %854 = vmatpush2.msra.mxu0 0.0
    %855 = vmatprep.subr.mxu0 0.0
    %856 = vmatpush2.msra.mxu0 0.0
    %857 = vmatprep.subr.mxu0 0.0
    %858 = vmatpush2.msra.mxu0 0.0
    %859 = vmatprep.subr.mxu0 0.0
    %860 = vmatpush2.msra.mxu0 0.0
    %861 = vmatprep.mubr.f32.mxu0 0.0
    %862 = vmatmul.mubr.f32.gmra.mxu0 %v795
    %v863 = vpop.f32.mrf.mxu0
    %v864 = vadd.f32 0.0, %v863
    %v865 = vpop.f32.mrf.mxu0
    %866 = vdwg.mxu0
    %v867 = vmul.f32 %v790, 0.03125
    %v868 = vmul.f32 %v864, 0.03125
    %v869 = vmul.f32 %v867, %v867
    %v870 = vsub.f32 %v868, %v869
    %v871 = vld [vmem:[%s8] sm:$0xff]
    %v872 = vadd.f32 %v870, 1e-05
    %v873 = vrsqrt.pop %v872
    %v874 = vmul.f32 %v871, %v873
    %v875 = vld [vmem:[%s9] sm:$0xff]
    %v876 = vmul.f32 %v867, %v874
    %v877 = vsub.f32 %v875, %v876
    %879 = vset.pattern.permute.xlu0 0
    %880 = vperm.xlu0 %879, %v874
    %v881 = vpop.permute.xlu0 %880
    %v883 = vmul.f32 %v715, %v881
    %885 = vset.pattern.permute.xlu0 0
    %886 = vperm.xlu0 %885, %v877
    %v887 = vpop.permute.xlu0 %886
    %v889 = vadd.f32 %v883, %v887
    %v890 = vmax.f32 %v889, 0.0
    %v891 = vld [vmem:[%s12] sm:$0xff]
    %v892 = vld [vmem:[%s12 + $0x8] sm:$0xff]
    %v893 = vld [vmem:[%s12 + $0x10] sm:$0xff]
    %v894 = vld [vmem:[%s13] sm:$0x1]
    %vm895 = vcmask 195584
    %v897 = vsel %vm895, %v890, 0
    %899 = vmatprep.subr.mxu0 0.0
    %900 = vmatpush1.msra.mxu0 0.0
    %901 = vmatprep.subr.mxu0 0.0
    %902 = vmatpush1.msra.mxu0 0.0
    %903 = vmatprep.subr.mxu0 0.0
    %904 = vmatpush1.msra.mxu0 0.0
    %905 = vmatprep.subr.mxu0 0.0
    %906 = vmatpush1.msra.mxu0 0.0
    %907 = vmatprep.subr.mxu0 0.0
    %908 = vmatpush1.msra.mxu0 0.0
    %909 = vmatprep.subr.mxu0 0.0
    %910 = vmatpush1.msra.mxu0 0.0
    %911 = vmatprep.subr.mxu0 0.0
    %912 = vmatpush1.msra.mxu0 0.0
    %913 = vmatprep.subr.mxu0 0.0
    %914 = vmatpush1.msra.mxu0 0.0
    %915 = vmatprep.subr.mxu0 0.0
    %916 = vmatpush1.msra.mxu0 0.0
    %917 = vmatprep.subr.mxu0 0.0
    %918 = vmatpush1.msra.mxu0 0.0
    %919 = vmatprep.subr.mxu0 0.0
    %920 = vmatpush1.msra.mxu0 0.0
    %921 = vmatprep.subr.mxu0 0.0
    %922 = vmatpush1.msra.mxu0 0.0
    %923 = vmatprep.subr.mxu0 0.0
    %924 = vmatpush1.msra.mxu0 0.0
    %925 = vmatprep.subr.mxu0 0.0
    %926 = vmatpush1.msra.mxu0 %v893
    %927 = vmatprep.subr.mxu0 0.0
    %928 = vmatpush1.msra.mxu0 %v892
    %929 = vmatprep.subr.mxu0 0.0
    %930 = vmatpush1.msra.mxu0 %v891
    %931 = vmatprep.subr.mxu0 0.0
    %932 = vmatpush2.msra.mxu0 0.0
    %933 = vmatprep.subr.mxu0 0.0
    %934 = vmatpush2.msra.mxu0 0.0
    %935 = vmatprep.subr.mxu0 0.0
    %936 = vmatpush2.msra.mxu0 0.0
    %937 = vmatprep.subr.mxu0 0.0
    %938 = vmatpush2.msra.mxu0 0.0
    %939 = vmatprep.subr.mxu0 0.0
    %940 = vmatpush2.msra.mxu0 0.0
    %941 = vmatprep.subr.mxu0 0.0
    %942 = vmatpush2.msra.mxu0 0.0
    %943 = vmatprep.subr.mxu0 0.0
    %944 = vmatpush2.msra.mxu0 0.0
    %945 = vmatprep.subr.mxu0 0.0
    %946 = vmatpush2.msra.mxu0 0.0
    %947 = vmatprep.subr.mxu0 0.0
    %948 = vmatpush2.msra.mxu0 0.0
    %949 = vmatprep.subr.mxu0 0.0
    %950 = vmatpush2.msra.mxu0 0.0
    %951 = vmatprep.subr.mxu0 0.0
    %952 = vmatpush2.msra.mxu0 0.0
    %953 = vmatprep.subr.mxu0 0.0
    %954 = vmatpush2.msra.mxu0 0.0
    %955 = vmatprep.subr.mxu0 0.0
    %956 = vmatpush2.msra.mxu0 0.0
    %957 = vmatprep.subr.mxu0 0.0
    %958 = vmatpush2.msra.mxu0 0.0
    %959 = vmatprep.subr.mxu0 0.0
    %960 = vmatpush2.msra.mxu0 0.0
    %961 = vmatprep.subr.mxu0 0.0
    %962 = vmatpush2.msra.mxu0 0.0
    %963 = vmatprep.mubr.f32.mxu0 0.0
    %964 = vmatmul.mubr.f32.gmra.mxu0 %v897
    %v965 = vpop.f32.mrf.mxu0
    %v966 = vadd.f32 0.0, %v965
    %v967 = vpop.f32.mrf.mxu0
    %968 = vdwg.mxu0
    %v970 = vlaneseq
    %v971 = vshrl.u32 %v970, 7
    %v972 = vsub.s32 0, %v971
    %v973 = vrot.slane %v894, %v972
    %v975 = vmul.f32 %v966, %v973
    %976 = vrot.lane.b32.xlu0 %v890, 104
    %v977 = vpop.permute.xlu0 %976
    %v978 = vsel %vm895, %v977, 0
    %980 = vmatprep.subr.mxu0 0.0
    %981 = vmatpush1.msra.mxu0 0.0
    %982 = vmatprep.subr.mxu0 0.0
    %983 = vmatpush1.msra.mxu0 0.0
    %984 = vmatprep.subr.mxu0 0.0
    %985 = vmatpush1.msra.mxu0 0.0
    %986 = vmatprep.subr.mxu0 0.0
    %987 = vmatpush1.msra.mxu0 0.0
    %988 = vmatprep.subr.mxu0 0.0
    %989 = vmatpush1.msra.mxu0 0.0
    %990 = vmatprep.subr.mxu0 0.0
    %991 = vmatpush1.msra.mxu0 0.0
    %992 = vmatprep.subr.mxu0 0.0
    %993 = vmatpush1.msra.mxu0 0.0
    %994 = vmatprep.subr.mxu0 0.0
    %995 = vmatpush1.msra.mxu0 0.0
    %996 = vmatprep.subr.mxu0 0.0
    %997 = vmatpush1.msra.mxu0 0.0
    %998 = vmatprep.subr.mxu0 0.0
    %999 = vmatpush1.msra.mxu0 0.0
    %1000 = vmatprep.subr.mxu0 0.0
    %1001 = vmatpush1.msra.mxu0 0.0
    %1002 = vmatprep.subr.mxu0 0.0
    %1003 = vmatpush1.msra.mxu0 0.0
    %1004 = vmatprep.subr.mxu0 0.0
    %1005 = vmatpush1.msra.mxu0 0.0
    %1006 = vmatprep.subr.mxu0 0.0
    %1007 = vmatpush1.msra.mxu0 %v893
    %1008 = vmatprep.subr.mxu0 0.0
    %1009 = vmatpush1.msra.mxu0 %v892
    %1010 = vmatprep.subr.mxu0 0.0
    %1011 = vmatpush1.msra.mxu0 %v891
    %1012 = vmatprep.subr.mxu0 0.0
    %1013 = vmatpush2.msra.mxu0 0.0
    %1014 = vmatprep.subr.mxu0 0.0
    %1015 = vmatpush2.msra.mxu0 0.0
    %1016 = vmatprep.subr.mxu0 0.0
    %1017 = vmatpush2.msra.mxu0 0.0
    %1018 = vmatprep.subr.mxu0 0.0
    %1019 = vmatpush2.msra.mxu0 0.0
    %1020 = vmatprep.subr.mxu0 0.0
    %1021 = vmatpush2.msra.mxu0 0.0
    %1022 = vmatprep.subr.mxu0 0.0
    %1023 = vmatpush2.msra.mxu0 0.0
    %1024 = vmatprep.subr.mxu0 0.0
    %1025 = vmatpush2.msra.mxu0 0.0
    %1026 = vmatprep.subr.mxu0 0.0
    %1027 = vmatpush2.msra.mxu0 0.0
    %1028 = vmatprep.subr.mxu0 0.0
    %1029 = vmatpush2.msra.mxu0 0.0
    %1030 = vmatprep.subr.mxu0 0.0
    %1031 = vmatpush2.msra.mxu0 0.0
    %1032 = vmatprep.subr.mxu0 0.0
    %1033 = vmatpush2.msra.mxu0 0.0
    %1034 = vmatprep.subr.mxu0 0.0
    %1035 = vmatpush2.msra.mxu0 0.0
    %1036 = vmatprep.subr.mxu0 0.0
    %1037 = vmatpush2.msra.mxu0 0.0
    %1038 = vmatprep.subr.mxu0 0.0
    %1039 = vmatpush2.msra.mxu0 0.0
    %1040 = vmatprep.subr.mxu0 0.0
    %1041 = vmatpush2.msra.mxu0 0.0
    %1042 = vmatprep.subr.mxu0 0.0
    %1043 = vmatpush2.msra.mxu0 0.0
    %1044 = vmatprep.mubr.f32.mxu0 0.0
    %1045 = vmatmul.mubr.f32.gmra.mxu0 %v978
    %v1046 = vpop.f32.mrf.mxu0
    %v1047 = vadd.f32 0.0, %v1046
    %v1048 = vpop.f32.mrf.mxu0
    %1049 = vdwg.mxu0
    %v1050 = vmul.f32 %v1047, %v973
    %1052 = vrot.lane.b32.xlu0 %v1050, 3
    %v1053 = vpop.permute.xlu0 %1052
    %vm1055 = vcmask 23552
    %v1056 = vsel %vm1055, %v975, %v1053
    %vm1057 = vcmask 48128
    %v1058 = vsel %vm1057, %v1056, 0.0
    %v1059 = vrot.slane %v1058, 4
    %v1060 = vmax.f32 %v1058, %v1059
    %v1061 = vrot.slane %v1060, 2
    %v1062 = vmax.f32 %v1060, %v1061
    %v1063 = vrot.slane %v1062, 1
    %v1064 = vmax.f32 %v1062, %v1063
    %v1065 = vsub.f32 %v1058, %v1064
    %v1066 = vmul.f32 %v1065, 1.442695
    %v1067 = vpow.pop %v1066
    %v1068 = vrot.slane %v1067, 4
    %v1069 = vadd.f32 %v1067, %v1068
    %v1070 = vrot.slane %v1069, 2
    %v1071 = vadd.f32 %v1069, %v1070
    %v1072 = vrot.slane %v1071, 1
    %v1073 = vadd.f32 %v1071, %v1072
    %v1074 = vrcp.pop %v1073
    %v1075 = vmul.f32 %v1067, %v1074
    %1076 = vst [vmem:[#allocation3] sm:$0xff] %v1075
    // Predicated region
    $region58: #{tpu_custom_call.1} parent=1 // pred_check
      _
    $region59: #{tpu_custom_call.1} parent=1 // pred_check_branch
      %1078 = sbr.rel (0) target = $region61
    $region60: #{tpu_custom_call.1} parent=1 // pred_region
      %s1080 = ssub.s32 128, 128
      %1081 = vsyncadd [#allocation4], %s1080
      %s1083 = sshll.u32 [#allocation3], 4
      %s1084 = int_to_ptr.vmem [resolvable:$true] %s1083
      %1086 = dma.vmem_to_hbm [thread:$0]  %s1084, 128, %s14, [#allocation4]
    $region61: #{tpu_custom_call.1} parent=1 // pred_fallthru
      _
    // Predicated region
    $region62: #{tpu_custom_call.1} parent=1 // pred_check
      _
    $region63: #{tpu_custom_call.1} parent=1 // pred_check_branch
      %1088 = sbr.rel (0) target = $region65
    $region64: #{tpu_custom_call.1} parent=1 // pred_region
      %1089 = dma.done [#allocation4], 128
    $region65: #{tpu_custom_call.1} parent=1 // pred_fallthru
      _
    %1090 = vsyncpa [#allocation4], 1

</llo_original>
